<compile_context>
chip_gen: v7x
topology: tpu7x:2x2x1
jax: 0.10.0
libtpu: 0.0.40
codegen_flags: <defaults>
</compile_context>

<pallas_src>
import functools

import jax
import jax.numpy as jnp
from jax.experimental import pallas as pl
from jax.experimental.pallas import tpu as pltpu


DPAD = 128    # lane-dense packed width for per-pixel head outputs
REGPAD = 8    # packed width for [scale, complexity-softmax] per-image outputs


# ----------------------------------------------------------------------------
# Fused kernel: conv(im2col matmul)+ReLU -> packed 1x1 heads -> GAP regressors.
# Grid is (batch, hw_blocks); GAP accumulates across the hw axis.
# ----------------------------------------------------------------------------
def fused_detector_kernel(p_ref, wconv_ref, bconv_ref, whead_ref, bhead_ref,
                          packed_ref, reg_ref, acc_ref, *, OFF, K, HW_TOTAL):
    # p_ref      : (1, THW, 9*Cin)  im2col patches of one HW tile of one image
    # wconv_ref  : (9*Cin, Cfeat)   conv weights, taps folded into K
    # bconv_ref  : (1, Cfeat)
    # whead_ref  : (Cfeat, DPAD)    [wc | wb | ws | wk | 0...]  lane-dense
    # bhead_ref  : (1, DPAD)
    # packed_ref : (1, THW, DPAD)   per-pixel [cls | box | (pre-act reg) | 0...]
    # reg_ref    : (1, 1, REGPAD)   [tanh(scale), softmax(complexity), 0...]
    # acc_ref    : (1, DPAD)        running sum over pixels of the head output
    hb = pl.program_id(1)

    @pl.when(hb == 0)
    def _():
        acc_ref[...] = jnp.zeros_like(acc_ref)

    patches = p_ref[0]                                        # (THW, 9*Cin)

    # Backbone: single wide MXU dot (K = 9*Cin) + bias + ReLU. Feature map stays
    # on-chip; it is never written to HBM.
    feat = jnp.dot(patches, wconv_ref[...],
                   preferred_element_type=jnp.float32)
    feat = jnp.maximum(feat + bconv_ref[...], 0.0)            # (THW, Cfeat)

    # All heads fused into one MXU dot with a lane-dense 128-wide output.
    head = jnp.dot(feat, whead_ref[...],
                   preferred_element_type=jnp.float32) + bhead_ref[...]
    packed_ref[...] = head[None]                              # unmasked full store

    # GAP and the regressor linears commute: mean_pixels(feat @ W + b) ==
    # GAP(feat) @ W + b, so accumulate the per-tile row-sum of the packed head
    # output (cheap XLU sublane reduce, no extra MXU push).
    acc_ref[...] += jnp.sum(head, axis=0, keepdims=True)

    @pl.when(hb == pl.num_programs(1) - 1)
    def _():
        reg = acc_ref[...] * (1.0 / HW_TOTAL)                 # (1, DPAD)

        # Scale regressor: linear -> tanh (output in [-1, 1]).
        scale = jnp.tanh(reg[:, OFF:OFF + 1])                 # (1, 1)

        # Complexity regressor: linear -> softmax (torch.softmax(dim=1)).
        logits = reg[:, OFF + 1:OFF + 1 + K]                  # (1, K)
        logits = logits - jnp.max(logits, axis=-1, keepdims=True)
        e = jnp.exp(logits)
        soft = e * pl.reciprocal(jnp.sum(e, axis=-1, keepdims=True),
                                 approx=True)

        pad = jnp.zeros((1, REGPAD - 1 - K), jnp.float32)
        reg_ref[...] = jnp.concatenate([scale, soft, pad],
                                       axis=-1).reshape(1, 1, REGPAD)


# ----------------------------------------------------------------------------
# Wrapper-side layout plumbing.
# ----------------------------------------------------------------------------
def _im2col_3x3(x):
    """(N,H,W,Cin) -> (N, H*W, 9*Cin), tap order (dy, dx, cin) row-major."""
    N, H, W, Cin = x.shape
    xp = jnp.pad(x, ((0, 0), (1, 1), (1, 1), (0, 0)))
    cols = [xp[:, dy:dy + H, dx:dx + W, :]
            for dy in range(3) for dx in range(3)]
    return jnp.concatenate(cols, axis=-1).reshape(N, H * W, 9 * Cin)


def pack_params(p):
    """Pre-pack weights for the fused kernel (done once at model build time)."""
    conv_w = p["conv_w"]
    kh, kw, cin, cfeat = conv_w.shape
    ncls = p["wc"].shape[-1]
    nbox = p["wb"].shape[-1]
    k = p["wk"].shape[-1]
    off = ncls + nbox
    assert off + 1 + k <= DPAD and 1 + k <= REGPAD

    wconv = conv_w.reshape(kh * kw * cin, cfeat)
    bconv = p["conv_b"].reshape(1, cfeat)

    whead = jnp.zeros((cfeat, DPAD), jnp.float32)
    whead = whead.at[:, :ncls].set(p["wc"])
    whead = whead.at[:, ncls:off].set(p["wb"])
    whead = whead.at[:, off:off + 1].set(p["ws"])
    whead = whead.at[:, off + 1:off + 1 + k].set(p["wk"])

    bhead = jnp.zeros((1, DPAD), jnp.float32)
    bhead = bhead.at[0, :ncls].set(p["bc"])
    bhead = bhead.at[0, ncls:off].set(p["bb"])
    bhead = bhead.at[0, off:off + 1].set(p["bs"])
    bhead = bhead.at[0, off + 1:off + 1 + k].set(p["bk"])

    return {"wconv": wconv, "bconv": bconv, "whead": whead, "bhead": bhead,
            "ncls": int(ncls), "nbox": int(nbox), "k": int(k),
            "cfeat": int(cfeat)}


def detector_forward(img, packed):
    N, H, W, Cin = img.shape
    ncls, nbox, k = packed["ncls"], packed["nbox"], packed["k"]
    cfeat = packed["cfeat"]
    off = ncls + nbox
    HW = H * W
    KIN = packed["wconv"].shape[0]

    # HW tiling: big lane-dense blocks, bounded VMEM footprint at large sizes.
    THW = HW if HW <= 512 else 512
    assert HW % THW == 0 and THW % 8 == 0, "H*W must tile into 8-row blocks"
    num_hw = HW // THW

    patches = _im2col_3x3(img)                                # (N, HW, 9*Cin)
    kern = functools.partial(fused_detector_kernel, OFF=off, K=k, HW_TOTAL=HW)

    packed_out, reg = pl.pallas_call(
        kern,
        out_shape=(
            jax.ShapeDtypeStruct((N, HW, DPAD), jnp.float32),
            jax.ShapeDtypeStruct((N, 1, REGPAD), jnp.float32),
        ),
        grid=(N, num_hw),
        in_specs=[
            pl.BlockSpec((1, THW, KIN), lambda n, h: (n, h, 0)),
            pl.BlockSpec((KIN, cfeat), lambda n, h: (0, 0)),
            pl.BlockSpec((1, cfeat), lambda n, h: (0, 0)),
            pl.BlockSpec((cfeat, DPAD), lambda n, h: (0, 0)),
            pl.BlockSpec((1, DPAD), lambda n, h: (0, 0)),
        ],
        out_specs=(
            pl.BlockSpec((1, THW, DPAD), lambda n, h: (n, h, 0)),
            pl.BlockSpec((1, 1, REGPAD), lambda n, h: (n, 0, 0)),
        ),
        scratch_shapes=[pltpu.VMEM((1, DPAD), jnp.float32)],
        compiler_params=pltpu.CompilerParams(
            dimension_semantics=("parallel", "arbitrary")),
    )(patches, packed["wconv"], packed["bconv"],
      packed["whead"], packed["bhead"])

    # Unpack the lane-dense slabs (pure layout plumbing in the wrapper).
    cls = packed_out[:, :, :ncls].reshape(N, H, W, ncls)
    box = packed_out[:, :, ncls:off].reshape(N, H, W, nbox)
    reg_scale = reg[:, 0, 0]                                  # (N,)
    switch_score = reg[:, 0, 1:1 + k]                         # (N, K)
    return cls, box, reg_scale, switch_score


# ----------------------------------------------------------------------------
# Plain-JAX glue: decode_regressed_scale (scalar math, matches PyTorch code).
# ----------------------------------------------------------------------------
TRAIN_SCALES = [(64, 32), (32, 16)]  # (w, h) pairs, like mmdet img_scale


def decode_regressed_scale(regressed_scale, orig_scale):
    scales = TRAIN_SCALES
    hi = scales[0][1]
    lo = scales[-1][1]
    new_scale = (regressed_scale + 1.0) * 0.5 * (hi * 1.0 / lo - lo * 1.0 / hi)
    new_scale = (new_scale + lo * 1.0 / hi) * orig_scale
    new_scale = new_scale.astype(jnp.int32)
    new_scale = jnp.clip(new_scale, lo, hi)
    return new_scale


# ----------------------------------------------------------------------------
# "Module": deterministic parameter init + forward.
# ----------------------------------------------------------------------------
class DetectorWithRegressors:
    def __init__(self, key, cin=4, cfeat=32, num_classes=8, num_switch=4):
        ks = jax.random.split(key, 10)
        f32 = jnp.float32
        self.params = {
            "conv_w": 0.1 * jax.random.normal(ks[0], (3, 3, cin, cfeat), f32),
            "conv_b": 0.1 * jax.random.normal(ks[1], (cfeat,), f32),
            "wc": 0.1 * jax.random.normal(ks[2], (cfeat, num_classes), f32),
            "bc": 0.1 * jax.random.normal(ks[3], (num_classes,), f32),
            "wb": 0.1 * jax.random.normal(ks[4], (cfeat, 4), f32),
            "bb": 0.1 * jax.random.normal(ks[5], (4,), f32),
            "ws": 0.1 * jax.random.normal(ks[6], (cfeat, 1), f32),
            "bs": 0.1 * jax.random.normal(ks[7], (1,), f32),
            "wk": 0.1 * jax.random.normal(ks[8], (cfeat, num_switch), f32),
            "bk": 0.1 * jax.random.normal(ks[9], (num_switch,), f32),
        }
        # Pack once; forward() reuses the packed lane-dense weights.
        self.packed = pack_params(self.params)

    def forward(self, img, predict_scale=False, get_metrics=False):
        cls, box, reg_scale, switch_score = detector_forward(img, self.packed)
        # TODO(synk): NMS / anchor decoding (get_bboxes, bbox2result) omitted.
        bbox_results = (cls, box)
        orig_scale = img.shape[1]  # list(NCHW shape)[2] == H == NHWC shape[1]
        if predict_scale:
            ada_scale = decode_regressed_scale(reg_scale, orig_scale)
            return bbox_results, ada_scale
        if get_metrics:
            ada_scale = decode_regressed_scale(reg_scale, orig_scale)
            return bbox_results, ada_scale, switch_score
        return bbox_results


# ----------------------------------------------------------------------------
# Pure-JAX reference for correctness.
# ----------------------------------------------------------------------------
def ref_forward(img, p):
    feat = jax.lax.conv_general_dilated(
        img, p["conv_w"], (1, 1), "SAME",
        dimension_numbers=("NHWC", "HWIO", "NHWC")) + p["conv_b"]
    feat = jnp.maximum(feat, 0.0)
    cls = jnp.einsum("nhwc,ck->nhwk", feat, p["wc"]) + p["bc"]
    box = jnp.einsum("nhwc,ck->nhwk", feat, p["wb"]) + p["bb"]
    gap = feat.mean(axis=(1, 2))
    scale = jnp.tanh(gap @ p["ws"] + p["bs"])
    comp = jax.nn.softmax(gap @ p["wk"] + p["bk"], axis=-1)
    return cls, box, scale, comp


if __name__ == "__main__":
    key = jax.random.PRNGKey(0)
    k_img, k_par = jax.random.split(key)

    N, H, W, Cin = 2, 16, 16, 4
    img = jax.random.normal(k_img, (N, H, W, Cin), jnp.float32)

    model = DetectorWithRegressors(k_par, cin=Cin, cfeat=32,
                                   num_classes=8, num_switch=4)

    (cls, box), ada_scale, switch_score = model.forward(img, get_metrics=True)
    jax.block_until_ready((cls, box, ada_scale, switch_score))

    # Correctness check against pure JAX.
    r_cls, r_box, r_scale, r_comp = ref_forward(img, model.params)
    r_ada = decode_regressed_scale(r_scale[:, 0], img.shape[1])
    assert jnp.allclose(cls, r_cls, atol=1e-3, rtol=1e-3)
    assert jnp.allclose(box, r_box, atol=1e-3, rtol=1e-3)
    assert jnp.allclose(switch_score, r_comp, atol=1e-3, rtol=1e-3)
    assert jnp.array_equal(ada_scale, r_ada)

    print("KERNEL_OK")
</pallas_src>

<mosaic_0001>
module attributes {stable_mosaic.version = 11 : i64} {
  func.func @fused_detector_kernel(%arg0: i32, %arg1: i32, %arg2: memref<1x256x36xf32, #tpu.memory_space<vmem>>, %arg3: memref<36x32xf32, #tpu.memory_space<vmem>>, %arg4: memref<1x32xf32, #tpu.memory_space<vmem>>, %arg5: memref<32x128xf32, #tpu.memory_space<vmem>>, %arg6: memref<1x128xf32, #tpu.memory_space<vmem>>, %arg7: memref<1x256x128xf32, #tpu.memory_space<vmem>>, %arg8: memref<1x1x8xf32, #tpu.memory_space<vmem>>, %arg9: memref<1x128xf32, #tpu.memory_space<vmem>>) attributes {dimension_semantics = [#tpu.dimension_semantics<parallel>, #tpu.dimension_semantics<arbitrary>], iteration_bounds = array<i64: 2, 1>, scalar_prefetch = 0 : i64, scratch_operands = 1 : i64, tpu.core_type = #tpu.core_type<tc>, window_params = [{transform_indices = @transform_0, window_bounds = array<i64: 1, 256, 36>}, {pipeline_mode = #tpu.pipeline_mode<synchronous>, transform_indices = @transform_1, window_bounds = array<i64: 36, 32>}, {pipeline_mode = #tpu.pipeline_mode<synchronous>, transform_indices = @transform_2, window_bounds = array<i64: 1, 32>}, {pipeline_mode = #tpu.pipeline_mode<synchronous>, transform_indices = @transform_3, window_bounds = array<i64: 32, 128>}, {pipeline_mode = #tpu.pipeline_mode<synchronous>, transform_indices = @transform_4, window_bounds = array<i64: 1, 128>}, {transform_indices = @transform_5, window_bounds = array<i64: 1, 256, 128>}, {transform_indices = @transform_6, window_bounds = array<i64: 1, 1, 8>}]} {
    %c0_i32 = arith.constant 0 : i32
    %0 = arith.cmpi eq, %arg1, %c0_i32 : i32
    %1 = arith.extui %0 : i1 to i32
    %c0_i32_0 = arith.constant 0 : i32
    %2 = arith.cmpi ne, %1, %c0_i32_0 : i32
    scf.if %2 {
      %cst_23 = arith.constant 0.000000e+00 : f32
      %27 = vector.broadcast %cst_23 : f32 to vector<1x128xf32>
      %c0_24 = arith.constant 0 : index
      %c0_25 = arith.constant 0 : index
      %28 = vector.load %arg9[%c0_24, %c0_25] : memref<1x128xf32, #tpu.memory_space<vmem>>, vector<1x128xf32>
      tpu.vector_store %arg9[%c0_24, %c0_25], %27 {strides = array<i32>} : memref<1x128xf32, #tpu.memory_space<vmem>>, vector<1x128xf32>,
    } else {
    }
    %c0 = arith.constant 0 : index
    %c0_1 = arith.constant 0 : index
    %c0_2 = arith.constant 0 : index
    %3 = vector.load %arg2[%c0, %c0_1, %c0_2] : memref<1x256x36xf32, #tpu.memory_space<vmem>>, vector<1x256x36xf32>
    %4 = vector.shape_cast %3 : vector<1x256x36xf32> to vector<256x36xf32>
    %c0_3 = arith.constant 0 : index
    %c0_4 = arith.constant 0 : index
    %5 = vector.load %arg3[%c0_3, %c0_4] : memref<36x32xf32, #tpu.memory_space<vmem>>, vector<36x32xf32>
    %cst = arith.constant dense<0.000000e+00> : vector<256x32xf32>
    %6 = tpu.matmul %4, %5, %cst {dimension_numbers = #tpu.dot_dimension_numbers<[1], [0], [0], [1], [0, 0, 1, 1], [], []>} : vector<256x36xf32>, vector<36x32xf32>, vector<256x32xf32> -> vector<256x32xf32>
    %c0_5 = arith.constant 0 : index
    %c0_6 = arith.constant 0 : index
    %7 = vector.load %arg4[%c0_5, %c0_6] : memref<1x32xf32, #tpu.memory_space<vmem>>, vector<1x32xf32>
    %8 = vector.broadcast %7 : vector<1x32xf32> to vector<256x32xf32>
    %9 = arith.addf %6, %8 : vector<256x32xf32>
    %cst_7 = arith.constant 0.000000e+00 : f32
    %10 = vector.broadcast %cst_7 : f32 to vector<256x32xf32>
    %11 = arith.maximumf %9, %10 : vector<256x32xf32>
    %c0_8 = arith.constant 0 : index
    %c0_9 = arith.constant 0 : index
    %12 = vector.load %arg5[%c0_8, %c0_9] : memref<32x128xf32, #tpu.memory_space<vmem>>, vector<32x128xf32>
    %cst_10 = arith.constant dense<0.000000e+00> : vector<256x128xf32>
    %13 = tpu.matmul %11, %12, %cst_10 {dimension_numbers = #tpu.dot_dimension_numbers<[1], [0], [0], [1], [0, 0, 1, 1], [], []>} : vector<256x32xf32>, vector<32x128xf32>, vector<256x128xf32> -> vector<256x128xf32>
    %c0_11 = arith.constant 0 : index
    %c0_12 = arith.constant 0 : index
    %14 = vector.load %arg6[%c0_11, %c0_12] : memref<1x128xf32, #tpu.memory_space<vmem>>, vector<1x128xf32>
    %15 = vector.broadcast %14 : vector<1x128xf32> to vector<256x128xf32>
    %16 = arith.addf %13, %15 : vector<256x128xf32>
    %17 = vector.shape_cast %16 : vector<256x128xf32> to vector<1x256x128xf32>
    %c0_13 = arith.constant 0 : index
    %c0_14 = arith.constant 0 : index
    %c0_15 = arith.constant 0 : index
    %18 = vector.load %arg7[%c0_13, %c0_14, %c0_15] : memref<1x256x128xf32, #tpu.memory_space<vmem>>, vector<1x256x128xf32>
    tpu.vector_store %arg7[%c0_13, %c0_14, %c0_15], %17 {strides = array<i32>} : memref<1x256x128xf32, #tpu.memory_space<vmem>>, vector<1x256x128xf32>,
    %c0_16 = arith.constant 0 : index
    %c0_17 = arith.constant 0 : index
    %19 = vector.load %arg9[%c0_16, %c0_17] : memref<1x128xf32, #tpu.memory_space<vmem>>, vector<1x128xf32>
    %cst_18 = arith.constant dense<0.000000e+00> : vector<128xf32>
    %20 = vector.multi_reduction <add>, %16, %cst_18 [0] : vector<256x128xf32> to vector<128xf32>
    %21 = vector.shape_cast %20 : vector<128xf32> to vector<1x128xf32>
    %22 = arith.addf %19, %21 : vector<1x128xf32>
    %c0_19 = arith.constant 0 : index
    %c0_20 = arith.constant 0 : index
    %23 = vector.load %arg9[%c0_19, %c0_20] : memref<1x128xf32, #tpu.memory_space<vmem>>, vector<1x128xf32>
    tpu.vector_store %arg9[%c0_19, %c0_20], %22 {strides = array<i32>} : memref<1x128xf32, #tpu.memory_space<vmem>>, vector<1x128xf32>,
    %c0_i32_21 = arith.constant 0 : i32
    %24 = arith.cmpi eq, %arg1, %c0_i32_21 : i32
    %25 = arith.extui %24 : i1 to i32
    %c0_i32_22 = arith.constant 0 : i32
    %26 = arith.cmpi ne, %25, %c0_i32_22 : i32
    scf.if %26 {
      %c0_23 = arith.constant 0 : index
      %c0_24 = arith.constant 0 : index
      %27 = vector.load %arg9[%c0_23, %c0_24] : memref<1x128xf32, #tpu.memory_space<vmem>>, vector<1x128xf32>
      %cst_25 = arith.constant 3.906250e-03 : f32
      %28 = vector.broadcast %cst_25 : f32 to vector<1x128xf32>
      %29 = arith.mulf %27, %28 : vector<1x128xf32>
      %30 = vector.extract_strided_slice %29 {offsets = [0, 12], sizes = [1, 1], strides = [1, 1]} : vector<1x128xf32> to vector<1x1xf32>
      %31 = math.tanh %30 : vector<1x1xf32>
      %32 = vector.extract_strided_slice %29 {offsets = [0, 13], sizes = [1, 4], strides = [1, 1]} : vector<1x128xf32> to vector<1x4xf32>
      %cst_26 = arith.constant dense<0xFF800000> : vector<1xf32>
      %33 = vector.multi_reduction <maximumf>, %32, %cst_26 [1] : vector<1x4xf32> to vector<1xf32>
      %34 = vector.shape_cast %33 : vector<1xf32> to vector<1x1xf32>
      %35 = vector.broadcast %34 : vector<1x1xf32> to vector<1x4xf32>
      %36 = arith.subf %32, %35 : vector<1x4xf32>
      %37 = math.exp %36 : vector<1x4xf32>
      %cst_27 = arith.constant dense<0.000000e+00> : vector<1xf32>
      %38 = vector.multi_reduction <add>, %37, %cst_27 [1] : vector<1x4xf32> to vector<1xf32>
      %39 = vector.shape_cast %38 : vector<1xf32> to vector<1x1xf32>
      %40 = tpu.reciprocal %39 {approx = true} : vector<1x1xf32> -> vector<1x1xf32>
      %41 = vector.broadcast %40 : vector<1x1xf32> to vector<1x4xf32>
      %42 = arith.mulf %37, %41 : vector<1x4xf32>
      %cst_28 = arith.constant 0.000000e+00 : f32
      %43 = vector.broadcast %cst_28 : f32 to vector<1x3xf32>
      %44 = tpu.concatenate %31, %42, %43 in 1 : vector<1x1xf32>, vector<1x4xf32>, vector<1x3xf32> -> vector<1x8xf32>
      %45 = vector.shape_cast %44 : vector<1x8xf32> to vector<1x1x8xf32>
      %c0_29 = arith.constant 0 : index
      %c0_30 = arith.constant 0 : index
      %c0_31 = arith.constant 0 : index
      %46 = vector.load %arg8[%c0_29, %c0_30, %c0_31] : memref<1x1x8xf32, #tpu.memory_space<vmem>>, vector<1x1x8xf32>
      tpu.vector_store %arg8[%c0_29, %c0_30, %c0_31], %45 {strides = array<i32>} : memref<1x1x8xf32, #tpu.memory_space<vmem>>, vector<1x1x8xf32>,
    } else {
    }
    return
  }
  func.func @transform_0(%arg0: i32, %arg1: i32) -> (i32, i32, i32) {
    %c0_i32 = arith.constant 0 : i32
    %c0_i32_0 = arith.constant 0 : i32
    return %arg0, %arg1, %c0_i32 : i32, i32, i32
  }
  func.func @transform_1(%arg0: i32, %arg1: i32) -> (i32, i32) {
    %c0_i32 = arith.constant 0 : i32
    %c0_i32_0 = arith.constant 0 : i32
    %c0_i32_1 = arith.constant 0 : i32
    return %c0_i32, %c0_i32_0 : i32, i32
  }
  func.func @transform_2(%arg0: i32, %arg1: i32) -> (i32, i32) {
    %c0_i32 = arith.constant 0 : i32
    %c0_i32_0 = arith.constant 0 : i32
    %c0_i32_1 = arith.constant 0 : i32
    return %c0_i32, %c0_i32_0 : i32, i32
  }
  func.func @transform_3(%arg0: i32, %arg1: i32) -> (i32, i32) {
    %c0_i32 = arith.constant 0 : i32
    %c0_i32_0 = arith.constant 0 : i32
    %c0_i32_1 = arith.constant 0 : i32
    return %c0_i32, %c0_i32_0 : i32, i32
  }
  func.func @transform_4(%arg0: i32, %arg1: i32) -> (i32, i32) {
    %c0_i32 = arith.constant 0 : i32
    %c0_i32_0 = arith.constant 0 : i32
    %c0_i32_1 = arith.constant 0 : i32
    return %c0_i32, %c0_i32_0 : i32, i32
  }
  func.func @transform_5(%arg0: i32, %arg1: i32) -> (i32, i32, i32) {
    %c0_i32 = arith.constant 0 : i32
    %c0_i32_0 = arith.constant 0 : i32
    return %arg0, %arg1, %c0_i32 : i32, i32, i32
  }
  func.func @transform_6(%arg0: i32, %arg1: i32) -> (i32, i32, i32) {
    %c0_i32 = arith.constant 0 : i32
    %c0_i32_0 = arith.constant 0 : i32
    %c0_i32_1 = arith.constant 0 : i32
    return %arg0, %c0_i32, %c0_i32_0 : i32, i32, i32
  }
}

</mosaic_0001>

<llo_original>
// kernel: tpu_custom_call.1
$region0: #{tpu_custom_call.1}
  #allocation0 [shape = 'u32[]', space=smem, size = 0x4, offset = 0x4, fixed_abs, tag = 'smem constant byte address 0x4 - core index']
  #allocation1 [shape = 'u32[144,128]{1,0:T(1,128)}', space=vmem, size = 0x12000, scoped, tag = 'internal scratch']
  #allocation2 [shape = 'f32[1,128]{1,0:T(1,128)}', space=vmem, size = 0x200, scoped, tag = 'scratch operand']
  %s0 = inlined_call_operand.vmem [shape: f32[2,256,36], index: 0, kind: input, shape index: {}]
  %s1 = inlined_call_operand.vmem [shape: f32[36,32], index: 1, kind: input, shape index: {}]
  %s2 = inlined_call_operand.vmem [shape: f32[1,32], index: 2, kind: input, shape index: {}]
  %s3 = inlined_call_operand.vmem [shape: f32[32,128], index: 3, kind: input, shape index: {}]
  %s4 = inlined_call_operand.vmem [shape: f32[1,128], index: 4, kind: input, shape index: {}]
  %s5 = inlined_call_operand.hbm [shape: f32[2,256,128], index: 5, kind: output, shape index: {0}]
  %s6 = inlined_call_operand.hbm [shape: f32[2,1,8], index: 6, kind: output, shape index: {1}]
  %7 = xla_tuple %s5, %s6
  %s8 = sld [smem:[#allocation0]]
  $region69: #{tpu_custom_call.1} parent=0
    _
  %s10 = ssub.s32 1, %s8
  %s11 = scalar_select 0, %s10, %s8
  $region1: #{tpu_custom_call.1} parent=0
    #allocation3 [shape = 'u8[262144]{0}', space=vmem, size = 0x40000, scoped, tag = 'output window, operand 0']
    #allocation4 [shape = 's32[2]{0}', space=sflag, size = 0x8, scoped, tag = 'scoped memory for tpu_custom_call.1']
    #allocation5 [shape = 'u8[1024]{0}', space=vmem, size = 0x400, scoped, tag = 'output window, operand 1']
    #allocation6 [shape = 's32[2]{0}', space=sflag, size = 0x8, scoped, tag = 'scoped memory for tpu_custom_call.1']
    %12 = vsyncpa [#allocation4], 0
    %s13 = scalar_lea.sflag [#allocation4], 1
    %14 = vsyncpa %s13, 0
    %15 = vsyncpa [#allocation6], 0
    %s16 = scalar_lea.sflag [#allocation6], 1
    %17 = vsyncpa %s16, 0
    loop: start=0, step=1, limit=4
    $region2: #{tpu_custom_call.1} parent=1 // loop_pre_header
      _
    $region3: #{tpu_custom_call.1} parent=1 // loop_header
      %s19 = sphi 0, %s23
      %p20 = scmp.ge.s32.totalorder %s19, 4
      %s26 = sphi 0, %s38
      %s27 = sphi 0, %s34
      %s28 = sphi 0, %s26
      %s29 = sphi 0, %s27
      %s30 = sphi 0, %s28
      %s31 = sphi 0, %s29
      %s43 = sphi 0, %s45
      %s46 = sphi 0, %s43
      %s47 = sphi 0, %s46
      %s63 = sphi 0, %s47
      %s67 = sphi 0, %s67
      %s69 = sphi 0, %s67
      %s70 = sphi 0, %s69
      %s84 = sphi 0, %s70
      %s88 = sphi 0, %s88
      %s90 = sphi 0, %s88
      %s91 = sphi 0, %s90
      %s105 = sphi 0, %s91
      %s109 = sphi 0, %s109
      %s111 = sphi 0, %s109
      %s112 = sphi 0, %s111
      %s126 = sphi 0, %s112
      %s130 = sphi 0, %s130
      %s132 = sphi 0, %s130
      %s133 = sphi 0, %s132
      %s147 = sphi 0, %s133
      %s155 = sphi 0, %s157
      %s158 = sphi 0, %s155
      %s159 = sphi 0, %s158
      %s175 = sphi 0, %s159
      %s181 = sphi 0, %s183
      %s184 = sphi 0, %s181
      %s185 = sphi 0, %s184
      %s201 = sphi 0, %s185
    $region4: #{tpu_custom_call.1} parent=1 // loop_header_branch
      %22 = sbr.rel (%p20) target = $region8
    $region5: #{tpu_custom_call.1} parent=1 // loop_body
      %s24 = ssub.s32 %s19, 1
      %s25 = ssub.s32 %s19, 2
      %s32 = sadd.s32 1, %s27
      %p33 = scmp.ge.s32.totalorder %s32, 1
      %s34 = scalar_select %p33, 0, %s32
      %s35 = sadd.s32 1, %s26
      %s36 = scalar_select %p33, %s35, %s26
      %p37 = scmp.ge.s32.totalorder %s36, 2
      %s38 = scalar_select %p37, 0, %s36
      %s39 = ssub.s32 %s26, %s38
      %s40 = ssub.s32 %s27, %s34
      %s41 = sor.u32 %s39, %s40
      %p42 = scmp.eq.s32.totalorder %s41, 0
      %s44 = sadd.s32 %s43, 1
      %s45 = scalar_select %p42, %s43, %s44
      %p48 = pneg %p42
      %p49 = scmp.eq.s32.totalorder %s19, 1
      %p50 = por %p48, %p49
      %p51 = scmp.ne.s32.totalorder %s43, %s46
      %p52 = scmp.eq.s32.totalorder %s19, 0
      %p53 = por %p51, %p52
      %p54 = scmp.ne.s32.totalorder %s43, %s46
      %p55 = scmp.eq.s32.totalorder %s24, 1
      %p56 = por %p54, %p55
      %p57 = scmp.ne.s32.totalorder %s46, %s47
      %p58 = scmp.eq.s32.totalorder %s24, 0
      %p59 = por %p57, %p58
      %p60 = scmp.ne.s32.totalorder %s46, %s47
      %p61 = scmp.eq.s32.totalorder %s25, 1
      %p62 = por %p60, %p61
      %p64 = scmp.ne.s32.totalorder %s47, %s63
      %p65 = scmp.eq.s32.totalorder %s25, 0
      %p66 = por %p64, %p65
      %s68 = sadd.s32 %s67, 1
      %p71 = scmp.eq.s32.totalorder %s19, 1
      %p72 = scmp.ne.s32.totalorder %s67, %s69
      %p73 = scmp.eq.s32.totalorder %s19, 0
      %p74 = por %p72, %p73
      %p75 = scmp.ne.s32.totalorder %s67, %s69
      %p76 = scmp.eq.s32.totalorder %s24, 1
      %p77 = por %p75, %p76
      %p78 = scmp.ne.s32.totalorder %s69, %s70
      %p79 = scmp.eq.s32.totalorder %s24, 0
      %p80 = por %p78, %p79
      %p81 = scmp.ne.s32.totalorder %s69, %s70
      %p82 = scmp.eq.s32.totalorder %s25, 1
      %p83 = por %p81, %p82
      %p85 = scmp.ne.s32.totalorder %s70, %s84
      %p86 = scmp.eq.s32.totalorder %s25, 0
      %p87 = por %p85, %p86
      %s89 = sadd.s32 %s88, 1
      %p92 = scmp.eq.s32.totalorder %s19, 1
      %p93 = scmp.ne.s32.totalorder %s88, %s90
      %p94 = scmp.eq.s32.totalorder %s19, 0
      %p95 = por %p93, %p94
      %p96 = scmp.ne.s32.totalorder %s88, %s90
      %p97 = scmp.eq.s32.totalorder %s24, 1
      %p98 = por %p96, %p97
      %p99 = scmp.ne.s32.totalorder %s90, %s91
      %p100 = scmp.eq.s32.totalorder %s24, 0
      %p101 = por %p99, %p100
      %p102 = scmp.ne.s32.totalorder %s90, %s91
      %p103 = scmp.eq.s32.totalorder %s25, 1
      %p104 = por %p102, %p103
      %p106 = scmp.ne.s32.totalorder %s91, %s105
      %p107 = scmp.eq.s32.totalorder %s25, 0
      %p108 = por %p106, %p107
      %s110 = sadd.s32 %s109, 1
      %p113 = scmp.eq.s32.totalorder %s19, 1
      %p114 = scmp.ne.s32.totalorder %s109, %s111
      %p115 = scmp.eq.s32.totalorder %s19, 0
      %p116 = por %p114, %p115
      %p117 = scmp.ne.s32.totalorder %s109, %s111
      %p118 = scmp.eq.s32.totalorder %s24, 1
      %p119 = por %p117, %p118
      %p120 = scmp.ne.s32.totalorder %s111, %s112
      %p121 = scmp.eq.s32.totalorder %s24, 0
      %p122 = por %p120, %p121
      %p123 = scmp.ne.s32.totalorder %s111, %s112
      %p124 = scmp.eq.s32.totalorder %s25, 1
      %p125 = por %p123, %p124
      %p127 = scmp.ne.s32.totalorder %s112, %s126
      %p128 = scmp.eq.s32.totalorder %s25, 0
      %p129 = por %p127, %p128
      %s131 = sadd.s32 %s130, 1
      %p134 = scmp.eq.s32.totalorder %s19, 1
      %p135 = scmp.ne.s32.totalorder %s130, %s132
      %p136 = scmp.eq.s32.totalorder %s19, 0
      %p137 = por %p135, %p136
      %p138 = scmp.ne.s32.totalorder %s130, %s132
      %p139 = scmp.eq.s32.totalorder %s24, 1
      %p140 = por %p138, %p139
      %p141 = scmp.ne.s32.totalorder %s132, %s133
      %p142 = scmp.eq.s32.totalorder %s24, 0
      %p143 = por %p141, %p142
      %p144 = scmp.ne.s32.totalorder %s132, %s133
      %p145 = scmp.eq.s32.totalorder %s25, 1
      %p146 = por %p144, %p145
      %p148 = scmp.ne.s32.totalorder %s133, %s147
      %p149 = scmp.eq.s32.totalorder %s25, 0
      %p150 = por %p148, %p149
      %s151 = ssub.s32 %s26, %s38
      %s152 = ssub.s32 %s27, %s34
      %s153 = sor.u32 %s151, %s152
      %p154 = scmp.eq.s32.totalorder %s153, 0
      %s156 = sadd.s32 %s155, 1
      %s157 = scalar_select %p154, %s155, %s156
      %p160 = pneg %p154
      %p161 = scmp.eq.s32.totalorder %s19, 1
      %p162 = por %p160, %p161
      %p163 = scmp.ne.s32.totalorder %s155, %s158
      %p164 = scmp.eq.s32.totalorder %s19, 0
      %p165 = por %p163, %p164
      %p166 = scmp.ne.s32.totalorder %s155, %s158
      %p167 = scmp.eq.s32.totalorder %s24, 1
      %p168 = por %p166, %p167
      %p169 = scmp.ne.s32.totalorder %s158, %s159
      %p170 = scmp.eq.s32.totalorder %s24, 0
      %p171 = por %p169, %p170
      %p172 = scmp.ne.s32.totalorder %s158, %s159
      %p173 = scmp.eq.s32.totalorder %s25, 1
      %p174 = por %p172, %p173
      %p176 = scmp.ne.s32.totalorder %s159, %s175
      %p177 = scmp.eq.s32.totalorder %s25, 0
      %p178 = por %p176, %p177
      %s179 = ssub.s32 %s26, %s38
      %p180 = scmp.eq.s32.totalorder %s179, 0
      %s182 = sadd.s32 %s181, 1
      %s183 = scalar_select %p180, %s181, %s182
      %p186 = pneg %p180
      %p187 = scmp.eq.s32.totalorder %s19, 1
      %p188 = por %p186, %p187
      %p189 = scmp.ne.s32.totalorder %s181, %s184
      %p190 = scmp.eq.s32.totalorder %s19, 0
      %p191 = por %p189, %p190
      %p192 = scmp.ne.s32.totalorder %s181, %s184
      %p193 = scmp.eq.s32.totalorder %s24, 1
      %p194 = por %p192, %p193
      %p195 = scmp.ne.s32.totalorder %s184, %s185
      %p196 = scmp.eq.s32.totalorder %s24, 0
      %p197 = por %p195, %p196
      %p198 = scmp.ne.s32.totalorder %s184, %s185
      %p199 = scmp.eq.s32.totalorder %s25, 1
      %p200 = por %p198, %p199
      %p202 = scmp.ne.s32.totalorder %s185, %s201
      %p203 = scmp.eq.s32.totalorder %s25, 0
      %p204 = por %p202, %p203
      %p205 = scmp.le.s32.totalorder 1, %s19
      %p206 = scmp.lt.s32.totalorder %s19, 3
      %p207 = pnand %p205, %p206
      %p208 = pneg %p207
      // Predicated region
      $region9: #{tpu_custom_call.1} parent=5 // pred_check
        _
      $region10: #{tpu_custom_call.1} parent=5 // pred_check_branch
        %210 = sbr.rel (%p207) target = $region12
      $region11: #{tpu_custom_call.1} parent=5 // pred_region
        %s211 = ssub.s32 %s19, 1
        // Predicated region
        $region13: #{tpu_custom_call.1} parent=11 // pred_check
          %p212 = pneg %p80
        $region14: #{tpu_custom_call.1} parent=11 // pred_check_branch
          %214 = sbr.rel (%p212) target = $region16
        $region15: #{tpu_custom_call.1} parent=11 // pred_region
          _
        $region16: #{tpu_custom_call.1} parent=11 // pred_fallthru
          _
        // Predicated region
        $region17: #{tpu_custom_call.1} parent=11 // pred_check
          %p215 = pneg %p101
        $region18: #{tpu_custom_call.1} parent=11 // pred_check_branch
          %217 = sbr.rel (%p215) target = $region20
        $region19: #{tpu_custom_call.1} parent=11 // pred_region
          _
        $region20: #{tpu_custom_call.1} parent=11 // pred_fallthru
          _
        // Predicated region
        $region21: #{tpu_custom_call.1} parent=11 // pred_check
          %p218 = pneg %p122
        $region22: #{tpu_custom_call.1} parent=11 // pred_check_branch
          %220 = sbr.rel (%p218) target = $region24
        $region23: #{tpu_custom_call.1} parent=11 // pred_region
          _
        $region24: #{tpu_custom_call.1} parent=11 // pred_fallthru
          _
        // Predicated region
        $region25: #{tpu_custom_call.1} parent=11 // pred_check
          %p221 = pneg %p143
        $region26: #{tpu_custom_call.1} parent=11 // pred_check_branch
          %223 = sbr.rel (%p221) target = $region28
        $region27: #{tpu_custom_call.1} parent=11 // pred_region
          _
        $region28: #{tpu_custom_call.1} parent=11 // pred_fallthru
          _
      $region12: #{tpu_custom_call.1} parent=5 // pred_fallthru
        _
      %p224 = scmp.lt.s32.totalorder %s19, 2
      // Predicated region
      $region29: #{tpu_custom_call.1} parent=5 // pred_check
        %p225 = pneg %p224
      $region30: #{tpu_custom_call.1} parent=5 // pred_check_branch
        %227 = sbr.rel (%p225) target = $region32
      $region31: #{tpu_custom_call.1} parent=5 // pred_region
        // Predicated region
        $region33: #{tpu_custom_call.1} parent=31 // pred_check
          %p228 = pneg %p53
        $region34: #{tpu_custom_call.1} parent=31 // pred_check_branch
          %230 = sbr.rel (%p228) target = $region36
        $region35: #{tpu_custom_call.1} parent=31 // pred_region
          %s231 = smul.u32 32, %s27
          %p232 = scmp.lt.s32.totalorder %s26, 1
          %s233 = scalar_select %p232, %s26, 1
          %p234 = scmp.lt.s32.totalorder %s231, 31
          %s235 = scalar_select %p234, %s231, 31
          %s236 = smul.addr %s233, 32
          %s237 = sadd.s32 %s235, %s236
          %s238 = smul.addr %s237, 8
          %s239 = scalar_lea.vmem %s0, %s238
          %s240 = smul.u32 32, %s27
        $region36: #{tpu_custom_call.1} parent=31 // pred_fallthru
          _
      $region32: #{tpu_custom_call.1} parent=5 // pred_fallthru
        _
      %p241 = scmp.le.s32.totalorder 1, %s19
      %p242 = scmp.lt.s32.totalorder %s19, 3
      %p243 = pnand %p241, %p242
      %p244 = pneg %p243
      // Predicated region
      $region37: #{tpu_custom_call.1} parent=5 // pred_check
        _
      $region38: #{tpu_custom_call.1} parent=5 // pred_check_branch
        %246 = sbr.rel (%p243) target = $region40
      $region39: #{tpu_custom_call.1} parent=5 // pred_region
        %s247 = ssub.s32 %s19, 1
        %s248 = smul.u32 32, %s29
        %p249 = scmp.lt.s32.totalorder %s28, 1
        %s250 = scalar_select %p249, %s28, 1
        %p251 = scmp.lt.s32.totalorder %s248, 31
        %s252 = scalar_select %p251, %s248, 31
        %s253 = smul.addr %s250, 32
        %s254 = sadd.s32 %s252, %s253
        %s255 = smul.addr %s254, 8
        %s256 = scalar_lea.vmem %s0, %s255
        %p257 = pneg %p59
        %p258 = pneg %p56
        %p259 = pneg %p80
        %p260 = pneg %p77
        %p261 = pneg %p101
        %p262 = pneg %p98
        %p263 = pneg %p122
        %p264 = pneg %p119
        %p265 = pneg %p143
        %p266 = pneg %p140
        %p267 = pneg %p171
        %p268 = pneg %p168
        %s269 = sand.u32 %s158, 1
        %s270 = scalar_lea.sflag [#allocation4], %s269
        %s271 = sand.u32 %s158, 1
        %s272 = smul.addr %s271, 256
        %s273 = scalar_lea.vmem [#allocation3], %s272
        %p274 = pneg %p197
        %p275 = pneg %p194
        %s276 = sand.u32 %s184, 1
        %s277 = scalar_lea.sflag [#allocation6], %s276
        %s278 = sand.u32 %s184, 1
        %s279 = scalar_lea.vmem [#allocation5], %s278
        %s280 = smul.u32 32, %s29
        %p281 = scmp.lt.s32.totalorder %s28, 1
        %s282 = scalar_select %p281, %s28, 1
        %p283 = scmp.lt.s32.totalorder %s280, 31
        %s284 = scalar_select %p283, %s280, 31
        %s285 = smul.addr %s282, 32
        %s286 = sadd.s32 %s284, %s285
        %s287 = smul.addr %s286, 8
        %s288 = scalar_lea.vmem %s0, %s287
        %s289 = smul.u32 32, %s29
        %s290 = smul.u32 32, %s29
        %p291 = scmp.eq.s32.totalorder %s29, 0
        // Predicated region
        $region41: #{tpu_custom_call.1} parent=39 // pred_check
          %p292 = pneg %p291
        $region42: #{tpu_custom_call.1} parent=39 // pred_check_branch
          %294 = sbr.rel (%p292) target = $region44
        $region43: #{tpu_custom_call.1} parent=39 // pred_region
          %295 = vst [vmem:[#allocation2] sm:$0x1] 0.0
        $region44: #{tpu_custom_call.1} parent=39 // pred_fallthru
          _
        %v296 = vld [vmem:[%s288] sm:$0xff]
        %v297 = vld [vmem:[%s288 + $0x8] sm:$0xff]
        %v298 = vld [vmem:[%s288 + $0x10] sm:$0xff]
        %v299 = vld [vmem:[%s288 + $0x18] sm:$0xff]
        %v300 = vld [vmem:[%s288 + $0x20] sm:$0xff]
        %v301 = vld [vmem:[%s288 + $0x28] sm:$0xff]
        %v302 = vld [vmem:[%s288 + $0x30] sm:$0xff]
        %v303 = vld [vmem:[%s288 + $0x38] sm:$0xff]
        %v304 = vld [vmem:[%s288 + $0x40] sm:$0xff]
        %v305 = vld [vmem:[%s288 + $0x48] sm:$0xff]
        %v306 = vld [vmem:[%s288 + $0x50] sm:$0xff]
        %v307 = vld [vmem:[%s288 + $0x58] sm:$0xff]
        %v308 = vld [vmem:[%s288 + $0x60] sm:$0xff]
        %v309 = vld [vmem:[%s288 + $0x68] sm:$0xff]
        %v310 = vld [vmem:[%s288 + $0x70] sm:$0xff]
        %v311 = vld [vmem:[%s288 + $0x78] sm:$0xff]
        %v312 = vld [vmem:[%s288 + $0x80] sm:$0xff]
        %v313 = vld [vmem:[%s288 + $0x88] sm:$0xff]
        %v314 = vld [vmem:[%s288 + $0x90] sm:$0xff]
        %v315 = vld [vmem:[%s288 + $0x98] sm:$0xff]
        %v316 = vld [vmem:[%s288 + $0xa0] sm:$0xff]
        %v317 = vld [vmem:[%s288 + $0xa8] sm:$0xff]
        %v318 = vld [vmem:[%s288 + $0xb0] sm:$0xff]
        %v319 = vld [vmem:[%s288 + $0xb8] sm:$0xff]
        %v320 = vld [vmem:[%s288 + $0xc0] sm:$0xff]
        %v321 = vld [vmem:[%s288 + $0xc8] sm:$0xff]
        %v322 = vld [vmem:[%s288 + $0xd0] sm:$0xff]
        %v323 = vld [vmem:[%s288 + $0xd8] sm:$0xff]
        %v324 = vld [vmem:[%s288 + $0xe0] sm:$0xff]
        %v325 = vld [vmem:[%s288 + $0xe8] sm:$0xff]
        %v326 = vld [vmem:[%s288 + $0xf0] sm:$0xff]
        %v327 = vld [vmem:[%s288 + $0xf8] sm:$0xff]
        %v328 = vld [vmem:[%s1] sm:$0xff]
        %v329 = vld [vmem:[%s1 + $0x8] sm:$0xff]
        %v330 = vld [vmem:[%s1 + $0x10] sm:$0xff]
        %v331 = vld [vmem:[%s1 + $0x18] sm:$0xff]
        %v332 = vld [vmem:[%s1 + $0x20] sm:$0xf]
        %v333 = vld [vmem:[%s2] sm:$0x1]
        %v335 = vlaneseq
        %v336 = vshrl.u32 %v335, 7
        %v337 = vsub.s32 0, %v336
        %v338 = vrot.slane %v333, %v337
        %vm340 = vcmask 293888
        %v342 = vsel %vm340, %v296, 0
        %v345 = vsel %vm340, %v297, 0
        %v348 = vsel %vm340, %v298, 0
        %v351 = vsel %vm340, %v299, 0
        %v354 = vsel %vm340, %v300, 0
        %v357 = vsel %vm340, %v301, 0
        %v360 = vsel %vm340, %v302, 0
        %v363 = vsel %vm340, %v303, 0
        %v366 = vsel %vm340, %v304, 0
        %v369 = vsel %vm340, %v305, 0
        %v372 = vsel %vm340, %v306, 0
        %v375 = vsel %vm340, %v307, 0
        %v378 = vsel %vm340, %v308, 0
        %v381 = vsel %vm340, %v309, 0
        %v384 = vsel %vm340, %v310, 0
        %v387 = vsel %vm340, %v311, 0
        %v390 = vsel %vm340, %v312, 0
        %v393 = vsel %vm340, %v313, 0
        %v396 = vsel %vm340, %v314, 0
        %v399 = vsel %vm340, %v315, 0
        %v402 = vsel %vm340, %v316, 0
        %v405 = vsel %vm340, %v317, 0
        %v408 = vsel %vm340, %v318, 0
        %v411 = vsel %vm340, %v319, 0
        %v414 = vsel %vm340, %v320, 0
        %v417 = vsel %vm340, %v321, 0
        %v420 = vsel %vm340, %v322, 0
        %v423 = vsel %vm340, %v323, 0
        %v426 = vsel %vm340, %v324, 0
        %v429 = vsel %vm340, %v325, 0
        %v432 = vsel %vm340, %v326, 0
        %v435 = vsel %vm340, %v327, 0
        %vm437 = vcmask 1043456
        %v439 = vsel %vm437, %v332, 0
        %441 = vmatprep.subr.mxu0 0.0
        %442 = vmatpush1.msra.mxu0 %v328
        %443 = vmatprep.subr.mxu0 0.0
        %444 = vmatpush1.msra.mxu0 %v329
        %445 = vmatprep.subr.mxu0 0.0
        %446 = vmatpush1.msra.mxu0 %v330
        %447 = vmatprep.subr.mxu0 0.0
        %448 = vmatpush1.msra.mxu0 %v331
        %449 = vmatprep.subr.mxu0 0.0
        %450 = vmatpush1.msra.mxu0 %v439
        %451 = vmatprep.subr.mxu0 0.0
        %452 = vmatpush1.msra.mxu0 0.0
        %453 = vmatprep.subr.mxu0 0.0
        %454 = vmatpush1.msra.mxu0 0.0
        %455 = vmatprep.subr.mxu0 0.0
        %456 = vmatpush1.msra.mxu0 0.0
        %457 = vmatprep.subr.mxu0 0.0
        %458 = vmatpush1.msra.mxu0 0.0
        %459 = vmatprep.subr.mxu0 0.0
        %460 = vmatpush1.msra.mxu0 0.0
        %461 = vmatprep.subr.mxu0 0.0
        %462 = vmatpush1.msra.mxu0 0.0
        %463 = vmatprep.subr.mxu0 0.0
        %464 = vmatpush1.msra.mxu0 0.0
        %465 = vmatprep.subr.mxu0 0.0
        %466 = vmatpush1.msra.mxu0 0.0
        %467 = vmatprep.subr.mxu0 0.0
        %468 = vmatpush1.msra.mxu0 0.0
        %469 = vmatprep.subr.mxu0 0.0
        %470 = vmatpush1.msra.mxu0 0.0
        %471 = vmatprep.subr.mxu0 0.0
        %472 = vmatpush1.msra.mxu0 0.0
        %473 = vmatprep.subr.mxu0 0.0
        %474 = vmatpush1.msra.mxu0 0.0
        %475 = vmatprep.subr.mxu0 0.0
        %476 = vmatpush1.msra.mxu0 0.0
        %477 = vmatprep.subr.mxu0 0.0
        %478 = vmatpush1.msra.mxu0 0.0
        %479 = vmatprep.subr.mxu0 0.0
        %480 = vmatpush1.msra.mxu0 0.0
        %481 = vmatprep.subr.mxu0 0.0
        %482 = vmatpush1.msra.mxu0 0.0
        %483 = vmatprep.subr.mxu0 0.0
        %484 = vmatpush1.msra.mxu0 0.0
        %485 = vmatprep.subr.mxu0 0.0
        %486 = vmatpush1.msra.mxu0 0.0
        %487 = vmatprep.subr.mxu0 0.0
        %488 = vmatpush1.msra.mxu0 0.0
        %489 = vmatprep.subr.mxu0 0.0
        %490 = vmatpush1.msra.mxu0 0.0
        %491 = vmatprep.subr.mxu0 0.0
        %492 = vmatpush1.msra.mxu0 0.0
        %493 = vmatprep.subr.mxu0 0.0
        %494 = vmatpush1.msra.mxu0 0.0
        %495 = vmatprep.subr.mxu0 0.0
        %496 = vmatpush1.msra.mxu0 0.0
        %497 = vmatprep.subr.mxu0 0.0
        %498 = vmatpush1.msra.mxu0 0.0
        %499 = vmatprep.subr.mxu0 0.0
        %500 = vmatpush1.msra.mxu0 0.0
        %501 = vmatprep.subr.mxu0 0.0
        %502 = vmatpush1.msra.mxu0 0.0
        %503 = vmatprep.subr.mxu0 0.0
        %504 = vmatpush1.msra.mxu0 0.0
        %505 = vmatprep.mubr.f32.mxu0 0.0
        %506 = vmatmul.mubr.f32.gmra.mrb[0].mxu0 %v342
        %v507 = vpop.f32.mrb[0].mxu0
        %v508 = vadd.f32 %v338, %v507
        %v509 = vpop.f32.mrb[0].mxu0
        %510 = vmatprep.mubr.f32.mxu0 0.0
        %511 = vmatmul.mubr.f32.gmra.mrb[0].mxu0 %v345
        %v512 = vpop.f32.mrb[0].mxu0
        %v513 = vadd.f32 %v338, %v512
        %v514 = vpop.f32.mrb[0].mxu0
        %515 = vmatprep.mubr.f32.mxu0 0.0
        %516 = vmatmul.mubr.f32.gmra.mrb[0].mxu0 %v348
        %v517 = vpop.f32.mrb[0].mxu0
        %v518 = vadd.f32 %v338, %v517
        %v519 = vpop.f32.mrb[0].mxu0
        %520 = vmatprep.mubr.f32.mxu0 0.0
        %521 = vmatmul.mubr.f32.gmra.mrb[0].mxu0 %v351
        %v522 = vpop.f32.mrb[0].mxu0
        %v523 = vadd.f32 %v338, %v522
        %v524 = vpop.f32.mrb[0].mxu0
        %525 = vmatprep.mubr.f32.mxu0 0.0
        %526 = vmatmul.mubr.f32.gmra.mrb[0].mxu0 %v354
        %v527 = vpop.f32.mrb[0].mxu0
        %v528 = vadd.f32 %v338, %v527
        %v529 = vpop.f32.mrb[0].mxu0
        %530 = vmatprep.mubr.f32.mxu0 0.0
        %531 = vmatmul.mubr.f32.gmra.mrb[0].mxu0 %v357
        %v532 = vpop.f32.mrb[0].mxu0
        %v533 = vadd.f32 %v338, %v532
        %v534 = vpop.f32.mrb[0].mxu0
        %535 = vmatprep.mubr.f32.mxu0 0.0
        %536 = vmatmul.mubr.f32.gmra.mrb[0].mxu0 %v360
        %v537 = vpop.f32.mrb[0].mxu0
        %v538 = vadd.f32 %v338, %v537
        %v539 = vpop.f32.mrb[0].mxu0
        %540 = vmatprep.mubr.f32.mxu0 0.0
        %541 = vmatmul.mubr.f32.gmra.mrb[0].mxu0 %v363
        %v542 = vpop.f32.mrb[0].mxu0
        %v543 = vadd.f32 %v338, %v542
        %v544 = vpop.f32.mrb[0].mxu0
        %545 = vmatprep.mubr.f32.mxu0 0.0
        %546 = vmatmul.mubr.f32.gmra.mrb[0].mxu0 %v366
        %v547 = vpop.f32.mrb[0].mxu0
        %v548 = vadd.f32 %v338, %v547
        %v549 = vpop.f32.mrb[0].mxu0
        %550 = vmatprep.mubr.f32.mxu0 0.0
        %551 = vmatmul.mubr.f32.gmra.mrb[0].mxu0 %v369
        %v552 = vpop.f32.mrb[0].mxu0
        %v553 = vadd.f32 %v338, %v552
        %v554 = vpop.f32.mrb[0].mxu0
        %555 = vmatprep.mubr.f32.mxu0 0.0
        %556 = vmatmul.mubr.f32.gmra.mrb[0].mxu0 %v372
        %v557 = vpop.f32.mrb[0].mxu0
        %v558 = vadd.f32 %v338, %v557
        %v559 = vpop.f32.mrb[0].mxu0
        %560 = vmatprep.mubr.f32.mxu0 0.0
        %561 = vmatmul.mubr.f32.gmra.mrb[0].mxu0 %v375
        %v562 = vpop.f32.mrb[0].mxu0
        %v563 = vadd.f32 %v338, %v562
        %v564 = vpop.f32.mrb[0].mxu0
        %565 = vmatprep.mubr.f32.mxu0 0.0
        %566 = vmatmul.mubr.f32.gmra.mrb[0].mxu0 %v378
        %v567 = vpop.f32.mrb[0].mxu0
        %v568 = vadd.f32 %v338, %v567
        %v569 = vpop.f32.mrb[0].mxu0
        %570 = vmatprep.mubr.f32.mxu0 0.0
        %571 = vmatmul.mubr.f32.gmra.mrb[0].mxu0 %v381
        %v572 = vpop.f32.mrb[0].mxu0
        %v573 = vadd.f32 %v338, %v572
        %v574 = vpop.f32.mrb[0].mxu0
        %575 = vmatprep.mubr.f32.mxu0 0.0
        %576 = vmatmul.mubr.f32.gmra.mrb[0].mxu0 %v384
        %v577 = vpop.f32.mrb[0].mxu0
        %v578 = vadd.f32 %v338, %v577
        %v579 = vpop.f32.mrb[0].mxu0
        %580 = vmatprep.mubr.f32.mxu0 0.0
        %581 = vmatmul.mubr.f32.gmra.mrb[0].mxu0 %v387
        %v582 = vpop.f32.mrb[0].mxu0
        %v583 = vadd.f32 %v338, %v582
        %v584 = vpop.f32.mrb[0].mxu0
        %585 = vmatprep.mubr.f32.mxu0 0.0
        %586 = vmatmul.mubr.f32.gmra.mrb[0].mxu0 %v390
        %v587 = vpop.f32.mrb[0].mxu0
        %v588 = vadd.f32 %v338, %v587
        %v589 = vpop.f32.mrb[0].mxu0
        %590 = vmatprep.mubr.f32.mxu0 0.0
        %591 = vmatmul.mubr.f32.gmra.mrb[0].mxu0 %v393
        %v592 = vpop.f32.mrb[0].mxu0
        %v593 = vadd.f32 %v338, %v592
        %v594 = vpop.f32.mrb[0].mxu0
        %595 = vmatprep.mubr.f32.mxu0 0.0
        %596 = vmatmul.mubr.f32.gmra.mrb[0].mxu0 %v396
        %v597 = vpop.f32.mrb[0].mxu0
        %v598 = vadd.f32 %v338, %v597
        %v599 = vpop.f32.mrb[0].mxu0
        %600 = vmatprep.mubr.f32.mxu0 0.0
        %601 = vmatmul.mubr.f32.gmra.mrb[0].mxu0 %v399
        %v602 = vpop.f32.mrb[0].mxu0
        %v603 = vadd.f32 %v338, %v602
        %v604 = vpop.f32.mrb[0].mxu0
        %605 = vmatprep.mubr.f32.mxu0 0.0
        %606 = vmatmul.mubr.f32.gmra.mrb[0].mxu0 %v402
        %v607 = vpop.f32.mrb[0].mxu0
        %v608 = vadd.f32 %v338, %v607
        %v609 = vpop.f32.mrb[0].mxu0
        %610 = vmatprep.mubr.f32.mxu0 0.0
        %611 = vmatmul.mubr.f32.gmra.mrb[0].mxu0 %v405
        %v612 = vpop.f32.mrb[0].mxu0
        %v613 = vadd.f32 %v338, %v612
        %v614 = vpop.f32.mrb[0].mxu0
        %615 = vmatprep.mubr.f32.mxu0 0.0
        %616 = vmatmul.mubr.f32.gmra.mrb[0].mxu0 %v408
        %v617 = vpop.f32.mrb[0].mxu0
        %v618 = vadd.f32 %v338, %v617
        %v619 = vpop.f32.mrb[0].mxu0
        %620 = vmatprep.mubr.f32.mxu0 0.0
        %621 = vmatmul.mubr.f32.gmra.mrb[0].mxu0 %v411
        %v622 = vpop.f32.mrb[0].mxu0
        %v623 = vadd.f32 %v338, %v622
        %v624 = vpop.f32.mrb[0].mxu0
        %625 = vmatprep.mubr.f32.mxu0 0.0
        %626 = vmatmul.mubr.f32.gmra.mrb[0].mxu0 %v414
        %v627 = vpop.f32.mrb[0].mxu0
        %v628 = vadd.f32 %v338, %v627
        %v629 = vpop.f32.mrb[0].mxu0
        %630 = vmatprep.mubr.f32.mxu0 0.0
        %631 = vmatmul.mubr.f32.gmra.mrb[0].mxu0 %v417
        %v632 = vpop.f32.mrb[0].mxu0
        %v633 = vadd.f32 %v338, %v632
        %v634 = vpop.f32.mrb[0].mxu0
        %635 = vmatprep.mubr.f32.mxu0 0.0
        %636 = vmatmul.mubr.f32.gmra.mrb[0].mxu0 %v420
        %v637 = vpop.f32.mrb[0].mxu0
        %v638 = vadd.f32 %v338, %v637
        %v639 = vpop.f32.mrb[0].mxu0
        %640 = vmatprep.mubr.f32.mxu0 0.0
        %641 = vmatmul.mubr.f32.gmra.mrb[0].mxu0 %v423
        %v642 = vpop.f32.mrb[0].mxu0
        %v643 = vadd.f32 %v338, %v642
        %v644 = vpop.f32.mrb[0].mxu0
        %645 = vmatprep.mubr.f32.mxu0 0.0
        %646 = vmatmul.mubr.f32.gmra.mrb[0].mxu0 %v426
        %v647 = vpop.f32.mrb[0].mxu0
        %v648 = vadd.f32 %v338, %v647
        %v649 = vpop.f32.mrb[0].mxu0
        %650 = vmatprep.mubr.f32.mxu0 0.0
        %651 = vmatmul.mubr.f32.gmra.mrb[0].mxu0 %v429
        %v652 = vpop.f32.mrb[0].mxu0
        %v653 = vadd.f32 %v338, %v652
        %v654 = vpop.f32.mrb[0].mxu0
        %655 = vmatprep.mubr.f32.mxu0 0.0
        %656 = vmatmul.mubr.f32.gmra.mrb[0].mxu0 %v432
        %v657 = vpop.f32.mrb[0].mxu0
        %v658 = vadd.f32 %v338, %v657
        %v659 = vpop.f32.mrb[0].mxu0
        %660 = vmatprep.mubr.f32.mxu0 0.0
        %661 = vmatmul.mubr.f32.gmra.mrb[0].mxu0 %v435
        %v662 = vpop.f32.mrb[0].mxu0
        %v663 = vadd.f32 %v338, %v662
        %v664 = vpop.f32.mrb[0].mxu0
        %665 = vdwg.mxu0
        %v666 = vmax.f32 %v508, 0.0
        %v667 = vmax.f32 %v513, 0.0
        %v668 = vmax.f32 %v518, 0.0
        %v669 = vmax.f32 %v523, 0.0
        %v670 = vmax.f32 %v528, 0.0
        %v671 = vmax.f32 %v533, 0.0
        %v672 = vmax.f32 %v538, 0.0
        %v673 = vmax.f32 %v543, 0.0
        %v674 = vmax.f32 %v548, 0.0
        %v675 = vmax.f32 %v553, 0.0
        %v676 = vmax.f32 %v558, 0.0
        %v677 = vmax.f32 %v563, 0.0
        %v678 = vmax.f32 %v568, 0.0
        %v679 = vmax.f32 %v573, 0.0
        %v680 = vmax.f32 %v578, 0.0
        %v681 = vmax.f32 %v583, 0.0
        %v682 = vmax.f32 %v588, 0.0
        %v683 = vmax.f32 %v593, 0.0
        %v684 = vmax.f32 %v598, 0.0
        %v685 = vmax.f32 %v603, 0.0
        %v686 = vmax.f32 %v608, 0.0
        %v687 = vmax.f32 %v613, 0.0
        %v688 = vmax.f32 %v618, 0.0
        %v689 = vmax.f32 %v623, 0.0
        %v690 = vmax.f32 %v628, 0.0
        %v691 = vmax.f32 %v633, 0.0
        %v692 = vmax.f32 %v638, 0.0
        %v693 = vmax.f32 %v643, 0.0
        %v694 = vmax.f32 %v648, 0.0
        %v695 = vmax.f32 %v653, 0.0
        %v696 = vmax.f32 %v658, 0.0
        %v697 = vmax.f32 %v663, 0.0
        %v698 = vld [vmem:[%s3] sm:$0xff]
        %v699 = vld [vmem:[%s3 + $0x8] sm:$0xff]
        %v700 = vld [vmem:[%s3 + $0x10] sm:$0xff]
        %v701 = vld [vmem:[%s3 + $0x18] sm:$0xff]
        %v702 = vld [vmem:[%s4] sm:$0x1]
        %v704 = vlaneseq
        %v705 = vshrl.u32 %v704, 7
        %v706 = vsub.s32 0, %v705
        %v707 = vrot.slane %v702, %v706
        %vm709 = vcmask 261120
        %v711 = vsel %vm709, %v666, 0
        %v714 = vsel %vm709, %v667, 0
        %v717 = vsel %vm709, %v668, 0
        %v720 = vsel %vm709, %v669, 0
        %v723 = vsel %vm709, %v670, 0
        %v726 = vsel %vm709, %v671, 0
        %v729 = vsel %vm709, %v672, 0
        %v732 = vsel %vm709, %v673, 0
        %v735 = vsel %vm709, %v674, 0
        %v738 = vsel %vm709, %v675, 0
        %v741 = vsel %vm709, %v676, 0
        %v744 = vsel %vm709, %v677, 0
        %v747 = vsel %vm709, %v678, 0
        %v750 = vsel %vm709, %v679, 0
        %v753 = vsel %vm709, %v680, 0
        %v756 = vsel %vm709, %v681, 0
        %v759 = vsel %vm709, %v682, 0
        %v762 = vsel %vm709, %v683, 0
        %v765 = vsel %vm709, %v684, 0
        %v768 = vsel %vm709, %v685, 0
        %v771 = vsel %vm709, %v686, 0
        %v774 = vsel %vm709, %v687, 0
        %v777 = vsel %vm709, %v688, 0
        %v780 = vsel %vm709, %v689, 0
        %v783 = vsel %vm709, %v690, 0
        %v786 = vsel %vm709, %v691, 0
        %v789 = vsel %vm709, %v692, 0
        %v792 = vsel %vm709, %v693, 0
        %v795 = vsel %vm709, %v694, 0
        %v798 = vsel %vm709, %v695, 0
        %v801 = vsel %vm709, %v696, 0
        %v804 = vsel %vm709, %v697, 0
        %806 = vmatprep.subr.mxu0 0.0
        %807 = vmatpush1.msra.mxu0 %v698
        %808 = vmatprep.subr.mxu0 0.0
        %809 = vmatpush1.msra.mxu0 %v699
        %810 = vmatprep.subr.mxu0 0.0
        %811 = vmatpush1.msra.mxu0 %v700
        %812 = vmatprep.subr.mxu0 0.0
        %813 = vmatpush1.msra.mxu0 %v701
        %814 = vmatprep.subr.mxu0 0.0
        %815 = vmatpush1.msra.mxu0 0.0
        %816 = vmatprep.subr.mxu0 0.0
        %817 = vmatpush1.msra.mxu0 0.0
        %818 = vmatprep.subr.mxu0 0.0
        %819 = vmatpush1.msra.mxu0 0.0
        %820 = vmatprep.subr.mxu0 0.0
        %821 = vmatpush1.msra.mxu0 0.0
        %822 = vmatprep.subr.mxu0 0.0
        %823 = vmatpush1.msra.mxu0 0.0
        %824 = vmatprep.subr.mxu0 0.0
        %825 = vmatpush1.msra.mxu0 0.0
        %826 = vmatprep.subr.mxu0 0.0
        %827 = vmatpush1.msra.mxu0 0.0
        %828 = vmatprep.subr.mxu0 0.0
        %829 = vmatpush1.msra.mxu0 0.0
        %830 = vmatprep.subr.mxu0 0.0
        %831 = vmatpush1.msra.mxu0 0.0
        %832 = vmatprep.subr.mxu0 0.0
        %833 = vmatpush1.msra.mxu0 0.0
        %834 = vmatprep.subr.mxu0 0.0
        %835 = vmatpush1.msra.mxu0 0.0
        %836 = vmatprep.subr.mxu0 0.0
        %837 = vmatpush1.msra.mxu0 0.0
        %838 = vmatprep.subr.mxu0 0.0
        %839 = vmatpush1.msra.mxu0 0.0
        %840 = vmatprep.subr.mxu0 0.0
        %841 = vmatpush1.msra.mxu0 0.0
        %842 = vmatprep.subr.mxu0 0.0
        %843 = vmatpush1.msra.mxu0 0.0
        %844 = vmatprep.subr.mxu0 0.0
        %845 = vmatpush1.msra.mxu0 0.0
        %846 = vmatprep.subr.mxu0 0.0
        %847 = vmatpush1.msra.mxu0 0.0
        %848 = vmatprep.subr.mxu0 0.0
        %849 = vmatpush1.msra.mxu0 0.0
        %850 = vmatprep.subr.mxu0 0.0
        %851 = vmatpush1.msra.mxu0 0.0
        %852 = vmatprep.subr.mxu0 0.0
        %853 = vmatpush1.msra.mxu0 0.0
        %854 = vmatprep.subr.mxu0 0.0
        %855 = vmatpush1.msra.mxu0 0.0
        %856 = vmatprep.subr.mxu0 0.0
        %857 = vmatpush1.msra.mxu0 0.0
        %858 = vmatprep.subr.mxu0 0.0
        %859 = vmatpush1.msra.mxu0 0.0
        %860 = vmatprep.subr.mxu0 0.0
        %861 = vmatpush1.msra.mxu0 0.0
        %862 = vmatprep.subr.mxu0 0.0
        %863 = vmatpush1.msra.mxu0 0.0
        %864 = vmatprep.subr.mxu0 0.0
        %865 = vmatpush1.msra.mxu0 0.0
        %866 = vmatprep.subr.mxu0 0.0
        %867 = vmatpush1.msra.mxu0 0.0
        %868 = vmatprep.subr.mxu0 0.0
        %869 = vmatpush1.msra.mxu0 0.0
        %870 = vmatprep.mubr.f32.mxu0 0.0
        %871 = vmatmul.mubr.f32.gmra.mrb[0].mxu0 %v711
        %v872 = vpop.f32.mrb[0].mxu0
        %v873 = vadd.f32 %v707, %v872
        %v874 = vpop.f32.mrb[0].mxu0
        %875 = vmatprep.mubr.f32.mxu0 0.0
        %876 = vmatmul.mubr.f32.gmra.mrb[0].mxu0 %v714
        %v877 = vpop.f32.mrb[0].mxu0
        %v878 = vadd.f32 %v707, %v877
        %v879 = vpop.f32.mrb[0].mxu0
        %880 = vmatprep.mubr.f32.mxu0 0.0
        %881 = vmatmul.mubr.f32.gmra.mrb[0].mxu0 %v717
        %v882 = vpop.f32.mrb[0].mxu0
        %v883 = vadd.f32 %v707, %v882
        %v884 = vpop.f32.mrb[0].mxu0
        %885 = vmatprep.mubr.f32.mxu0 0.0
        %886 = vmatmul.mubr.f32.gmra.mrb[0].mxu0 %v720
        %v887 = vpop.f32.mrb[0].mxu0
        %v888 = vadd.f32 %v707, %v887
        %v889 = vpop.f32.mrb[0].mxu0
        %890 = vmatprep.mubr.f32.mxu0 0.0
        %891 = vmatmul.mubr.f32.gmra.mrb[0].mxu0 %v723
        %v892 = vpop.f32.mrb[0].mxu0
        %v893 = vadd.f32 %v707, %v892
        %v894 = vpop.f32.mrb[0].mxu0
        %895 = vmatprep.mubr.f32.mxu0 0.0
        %896 = vmatmul.mubr.f32.gmra.mrb[0].mxu0 %v726
        %v897 = vpop.f32.mrb[0].mxu0
        %v898 = vadd.f32 %v707, %v897
        %v899 = vpop.f32.mrb[0].mxu0
        %900 = vmatprep.mubr.f32.mxu0 0.0
        %901 = vmatmul.mubr.f32.gmra.mrb[0].mxu0 %v729
        %v902 = vpop.f32.mrb[0].mxu0
        %v903 = vadd.f32 %v707, %v902
        %v904 = vpop.f32.mrb[0].mxu0
        %905 = vmatprep.mubr.f32.mxu0 0.0
        %906 = vmatmul.mubr.f32.gmra.mrb[0].mxu0 %v732
        %v907 = vpop.f32.mrb[0].mxu0
        %v908 = vadd.f32 %v707, %v907
        %v909 = vpop.f32.mrb[0].mxu0
        %910 = vmatprep.mubr.f32.mxu0 0.0
        %911 = vmatmul.mubr.f32.gmra.mrb[0].mxu0 %v735
        %v912 = vpop.f32.mrb[0].mxu0
        %v913 = vadd.f32 %v707, %v912
        %v914 = vpop.f32.mrb[0].mxu0
        %915 = vmatprep.mubr.f32.mxu0 0.0
        %916 = vmatmul.mubr.f32.gmra.mrb[0].mxu0 %v738
        %v917 = vpop.f32.mrb[0].mxu0
        %v918 = vadd.f32 %v707, %v917
        %v919 = vpop.f32.mrb[0].mxu0
        %920 = vmatprep.mubr.f32.mxu0 0.0
        %921 = vmatmul.mubr.f32.gmra.mrb[0].mxu0 %v741
        %v922 = vpop.f32.mrb[0].mxu0
        %v923 = vadd.f32 %v707, %v922
        %v924 = vpop.f32.mrb[0].mxu0
        %925 = vmatprep.mubr.f32.mxu0 0.0
        %926 = vmatmul.mubr.f32.gmra.mrb[0].mxu0 %v744
        %v927 = vpop.f32.mrb[0].mxu0
        %v928 = vadd.f32 %v707, %v927
        %v929 = vpop.f32.mrb[0].mxu0
        %930 = vmatprep.mubr.f32.mxu0 0.0
        %931 = vmatmul.mubr.f32.gmra.mrb[0].mxu0 %v747
        %v932 = vpop.f32.mrb[0].mxu0
        %v933 = vadd.f32 %v707, %v932
        %v934 = vpop.f32.mrb[0].mxu0
        %935 = vmatprep.mubr.f32.mxu0 0.0
        %936 = vmatmul.mubr.f32.gmra.mrb[0].mxu0 %v750
        %v937 = vpop.f32.mrb[0].mxu0
        %v938 = vadd.f32 %v707, %v937
        %v939 = vpop.f32.mrb[0].mxu0
        %940 = vmatprep.mubr.f32.mxu0 0.0
        %941 = vmatmul.mubr.f32.gmra.mrb[0].mxu0 %v753
        %v942 = vpop.f32.mrb[0].mxu0
        %v943 = vadd.f32 %v707, %v942
        %v944 = vpop.f32.mrb[0].mxu0
        %945 = vmatprep.mubr.f32.mxu0 0.0
        %946 = vmatmul.mubr.f32.gmra.mrb[0].mxu0 %v756
        %v947 = vpop.f32.mrb[0].mxu0
        %v948 = vadd.f32 %v707, %v947
        %v949 = vpop.f32.mrb[0].mxu0
        %950 = vmatprep.mubr.f32.mxu0 0.0
        %951 = vmatmul.mubr.f32.gmra.mrb[0].mxu0 %v759
        %v952 = vpop.f32.mrb[0].mxu0
        %v953 = vadd.f32 %v707, %v952
        %v954 = vpop.f32.mrb[0].mxu0
        %955 = vmatprep.mubr.f32.mxu0 0.0
        %956 = vmatmul.mubr.f32.gmra.mrb[0].mxu0 %v762
        %v957 = vpop.f32.mrb[0].mxu0
        %v958 = vadd.f32 %v707, %v957
        %v959 = vpop.f32.mrb[0].mxu0
        %960 = vmatprep.mubr.f32.mxu0 0.0
        %961 = vmatmul.mubr.f32.gmra.mrb[0].mxu0 %v765
        %v962 = vpop.f32.mrb[0].mxu0
        %v963 = vadd.f32 %v707, %v962
        %v964 = vpop.f32.mrb[0].mxu0
        %965 = vmatprep.mubr.f32.mxu0 0.0
        %966 = vmatmul.mubr.f32.gmra.mrb[0].mxu0 %v768
        %v967 = vpop.f32.mrb[0].mxu0
        %v968 = vadd.f32 %v707, %v967
        %v969 = vpop.f32.mrb[0].mxu0
        %970 = vmatprep.mubr.f32.mxu0 0.0
        %971 = vmatmul.mubr.f32.gmra.mrb[0].mxu0 %v771
        %v972 = vpop.f32.mrb[0].mxu0
        %v973 = vadd.f32 %v707, %v972
        %v974 = vpop.f32.mrb[0].mxu0
        %975 = vmatprep.mubr.f32.mxu0 0.0
        %976 = vmatmul.mubr.f32.gmra.mrb[0].mxu0 %v774
        %v977 = vpop.f32.mrb[0].mxu0
        %v978 = vadd.f32 %v707, %v977
        %v979 = vpop.f32.mrb[0].mxu0
        %980 = vmatprep.mubr.f32.mxu0 0.0
        %981 = vmatmul.mubr.f32.gmra.mrb[0].mxu0 %v777
        %v982 = vpop.f32.mrb[0].mxu0
        %v983 = vadd.f32 %v707, %v982
        %v984 = vpop.f32.mrb[0].mxu0
        %985 = vmatprep.mubr.f32.mxu0 0.0
        %986 = vmatmul.mubr.f32.gmra.mrb[0].mxu0 %v780
        %v987 = vpop.f32.mrb[0].mxu0
        %v988 = vadd.f32 %v707, %v987
        %v989 = vpop.f32.mrb[0].mxu0
        %990 = vmatprep.mubr.f32.mxu0 0.0
        %991 = vmatmul.mubr.f32.gmra.mrb[0].mxu0 %v783
        %v992 = vpop.f32.mrb[0].mxu0
        %v993 = vadd.f32 %v707, %v992
        %v994 = vpop.f32.mrb[0].mxu0
        %995 = vmatprep.mubr.f32.mxu0 0.0
        %996 = vmatmul.mubr.f32.gmra.mrb[0].mxu0 %v786
        %v997 = vpop.f32.mrb[0].mxu0
        %v998 = vadd.f32 %v707, %v997
        %v999 = vpop.f32.mrb[0].mxu0
        %1000 = vmatprep.mubr.f32.mxu0 0.0
        %1001 = vmatmul.mubr.f32.gmra.mrb[0].mxu0 %v789
        %v1002 = vpop.f32.mrb[0].mxu0
        %v1003 = vadd.f32 %v707, %v1002
        %v1004 = vpop.f32.mrb[0].mxu0
        %1005 = vmatprep.mubr.f32.mxu0 0.0
        %1006 = vmatmul.mubr.f32.gmra.mrb[0].mxu0 %v792
        %v1007 = vpop.f32.mrb[0].mxu0
        %v1008 = vadd.f32 %v707, %v1007
        %v1009 = vpop.f32.mrb[0].mxu0
        %1010 = vmatprep.mubr.f32.mxu0 0.0
        %1011 = vmatmul.mubr.f32.gmra.mrb[0].mxu0 %v795
        %v1012 = vpop.f32.mrb[0].mxu0
        %v1013 = vadd.f32 %v707, %v1012
        %v1014 = vpop.f32.mrb[0].mxu0
        %1015 = vmatprep.mubr.f32.mxu0 0.0
        %1016 = vmatmul.mubr.f32.gmra.mrb[0].mxu0 %v798
        %v1017 = vpop.f32.mrb[0].mxu0
        %v1018 = vadd.f32 %v707, %v1017
        %v1019 = vpop.f32.mrb[0].mxu0
        %1020 = vmatprep.mubr.f32.mxu0 0.0
        %1021 = vmatmul.mubr.f32.gmra.mrb[0].mxu0 %v801
        %v1022 = vpop.f32.mrb[0].mxu0
        %v1023 = vadd.f32 %v707, %v1022
        %v1024 = vpop.f32.mrb[0].mxu0
        %1025 = vmatprep.mubr.f32.mxu0 0.0
        %1026 = vmatmul.mubr.f32.gmra.mrb[0].mxu0 %v804
        %v1027 = vpop.f32.mrb[0].mxu0
        %v1028 = vadd.f32 %v707, %v1027
        %v1029 = vpop.f32.mrb[0].mxu0
        %1030 = vdwg.mxu0
        %1031 = vst [vmem:[%s273] sm:$0xff] %v873
        %1032 = vst [vmem:[%s273 + $0x8] sm:$0xff] %v878
        %1033 = vst [vmem:[%s273 + $0x10] sm:$0xff] %v883
        %1034 = vst [vmem:[%s273 + $0x18] sm:$0xff] %v888
        %1035 = vst [vmem:[%s273 + $0x20] sm:$0xff] %v893
        %1036 = vst [vmem:[%s273 + $0x28] sm:$0xff] %v898
        %1037 = vst [vmem:[%s273 + $0x30] sm:$0xff] %v903
        %1038 = vst [vmem:[%s273 + $0x38] sm:$0xff] %v908
        %1039 = vst [vmem:[%s273 + $0x40] sm:$0xff] %v913
        %1040 = vst [vmem:[%s273 + $0x48] sm:$0xff] %v918
        %1041 = vst [vmem:[%s273 + $0x50] sm:$0xff] %v923
        %1042 = vst [vmem:[%s273 + $0x58] sm:$0xff] %v928
        %1043 = vst [vmem:[%s273 + $0x60] sm:$0xff] %v933
        %1044 = vst [vmem:[%s273 + $0x68] sm:$0xff] %v938
        %1045 = vst [vmem:[%s273 + $0x70] sm:$0xff] %v943
        %1046 = vst [vmem:[%s273 + $0x78] sm:$0xff] %v948
        %1047 = vst [vmem:[%s273 + $0x80] sm:$0xff] %v953
        %1048 = vst [vmem:[%s273 + $0x88] sm:$0xff] %v958
        %1049 = vst [vmem:[%s273 + $0x90] sm:$0xff] %v963
        %1050 = vst [vmem:[%s273 + $0x98] sm:$0xff] %v968
        %1051 = vst [vmem:[%s273 + $0xa0] sm:$0xff] %v973
        %1052 = vst [vmem:[%s273 + $0xa8] sm:$0xff] %v978
        %1053 = vst [vmem:[%s273 + $0xb0] sm:$0xff] %v983
        %1054 = vst [vmem:[%s273 + $0xb8] sm:$0xff] %v988
        %1055 = vst [vmem:[%s273 + $0xc0] sm:$0xff] %v993
        %1056 = vst [vmem:[%s273 + $0xc8] sm:$0xff] %v998
        %1057 = vst [vmem:[%s273 + $0xd0] sm:$0xff] %v1003
        %1058 = vst [vmem:[%s273 + $0xd8] sm:$0xff] %v1008
        %1059 = vst [vmem:[%s273 + $0xe0] sm:$0xff] %v1013
        %1060 = vst [vmem:[%s273 + $0xe8] sm:$0xff] %v1018
        %1061 = vst [vmem:[%s273 + $0xf0] sm:$0xff] %v1023
        %1062 = vst [vmem:[%s273 + $0xf8] sm:$0xff] %v1028
        %v1063 = vld [vmem:[#allocation2] sm:$0x1]
        %v1064 = vadd.f32 %v873, %v878
        %v1065 = vadd.f32 %v1064, %v883
        %v1066 = vadd.f32 %v1065, %v888
        %v1067 = vadd.f32 %v1066, %v893
        %v1068 = vadd.f32 %v1067, %v898
        %v1069 = vadd.f32 %v1068, %v903
        %v1070 = vadd.f32 %v1069, %v908
        %v1071 = vadd.f32 %v1070, %v913
        %v1072 = vadd.f32 %v1071, %v918
        %v1073 = vadd.f32 %v1072, %v923
        %v1074 = vadd.f32 %v1073, %v928
        %v1075 = vadd.f32 %v1074, %v933
        %v1076 = vadd.f32 %v1075, %v938
        %v1077 = vadd.f32 %v1076, %v943
        %v1078 = vadd.f32 %v1077, %v948
        %v1079 = vadd.f32 %v1078, %v953
        %v1080 = vadd.f32 %v1079, %v958
        %v1081 = vadd.f32 %v1080, %v963
        %v1082 = vadd.f32 %v1081, %v968
        %v1083 = vadd.f32 %v1082, %v973
        %v1084 = vadd.f32 %v1083, %v978
        %v1085 = vadd.f32 %v1084, %v983
        %v1086 = vadd.f32 %v1085, %v988
        %v1087 = vadd.f32 %v1086, %v993
        %v1088 = vadd.f32 %v1087, %v998
        %v1089 = vadd.f32 %v1088, %v1003
        %v1090 = vadd.f32 %v1089, %v1008
        %v1091 = vadd.f32 %v1090, %v1013
        %v1092 = vadd.f32 %v1091, %v1018
        %v1093 = vadd.f32 %v1092, %v1023
        %v1094 = vadd.f32 %v1093, %v1028
        %v1095 = vrot.slane %v1094, 4
        %v1096 = vadd.f32 %v1094, %v1095
        %v1097 = vrot.slane %v1096, 2
        %v1098 = vadd.f32 %v1096, %v1097
        %v1099 = vrot.slane %v1098, 1
        %v1100 = vadd.f32 %v1098, %v1099
        %v1101 = vadd.f32 %v1063, %v1100
        %1102 = vst [vmem:[#allocation2] sm:$0x1] %v1101
        // Predicated region
        $region45: #{tpu_custom_call.1} parent=39 // pred_check
          %p1103 = pneg %p291
        $region46: #{tpu_custom_call.1} parent=39 // pred_check_branch
          %1105 = sbr.rel (%p1103) target = $region48
        $region47: #{tpu_custom_call.1} parent=39 // pred_region
          %v1106 = vld [vmem:[#allocation2] sm:$0x1]
          %v1107 = vmul.f32 %v1106, 0.00390625
          %v1108 = vtanh.pop %v1107
          %vm1109 = vcmask 131176
          %v1110 = vsel %vm1109, %v1107, -inf
          %1111 = vmax.xlane.f32.xlu0 %v1110
          %v1112 = vpop.xlane.xlu0 %1111
          %v1113 = vsub.f32 %v1107, %v1112
          %v1114 = vmul.f32 %v1113, 1.442695
          %v1115 = vpow.pop %v1114
          %v1117 = vlaneseq
          %v1118 = vshrl.u32 %v1117, 7
          %v1119 = vsub.s32 0, %v1118
          %v1120 = vrot.slane %v1115, %v1119
          %1121 = vrot.lane.b32.xlu0 %v1120, 115
          %v1122 = vpop.permute.xlu0 %1121
          %vm1124 = vcmask 24576
          %v1125 = vsel %vm1124, %v1122, 0.0
          %1126 = vadd.xlane.f32.xlu0 %v1125
          %v1127 = vpop.xlane.xlu0 %1126
          %v1128 = vrcp.pop %v1127
          %v1129 = vmul.f32 %v1115, %v1128
          %v1131 = vlaneseq
          %v1132 = vshrl.u32 %v1131, 7
          %v1133 = vsub.s32 0, %v1132
          %v1134 = vrot.slane %v1108, %v1133
          %1135 = vrot.lane.b32.xlu0 %v1134, 116
          %v1136 = vpop.permute.xlu0 %1135
          %v1139 = vlaneseq
          %v1140 = vshrl.u32 %v1139, 7
          %v1141 = vsub.s32 0, %v1140
          %v1142 = vrot.slane %v1129, %v1141
          %1143 = vrot.lane.b32.xlu0 %v1142, 116
          %v1144 = vpop.permute.xlu0 %1143
          %vm1146 = vcmask 7168
          %v1147 = vsel %vm1146, %v1136, %v1144
          %vm1148 = vcmask 39936
          %v1149 = vsel %vm1148, %v1147, 0.0
          %vm1150 = vcmask 57344
          %1151 = vst.msk [vmem:[%s279] sm:$0x1] %vm1150, %v1149
        $region48: #{tpu_custom_call.1} parent=39 // pred_fallthru
          _
        %s1152 = sand.u32 %s158, 1
        %s1153 = scalar_lea.sflag [#allocation4], %s1152
        %s1154 = sand.u32 %s158, 1
        %s1155 = smul.addr %s1154, 256
        %s1156 = scalar_lea.vmem [#allocation3], %s1155
        %s1157 = sand.u32 %s184, 1
        %s1158 = scalar_lea.sflag [#allocation6], %s1157
        %s1159 = sand.u32 %s184, 1
        %s1160 = scalar_lea.vmem [#allocation5], %s1159
        // Predicated region
        $region49: #{tpu_custom_call.1} parent=39 // pred_check
          %p1161 = pneg %p168
        $region50: #{tpu_custom_call.1} parent=39 // pred_check_branch
          %1163 = sbr.rel (%p1161) target = $region52
        $region51: #{tpu_custom_call.1} parent=39 // pred_region
          %s1164 = smul.u32 32, %s29
          %s1166 = ssub.s32 4096, 4096
          %1167 = vsyncadd %s1153, %s1166
          %s1168 = smul.addr %s28, 32
          %s1169 = sadd.s32 %s1164, %s1168
          %s1170 = smul.addr %s1169, 128
          %s1171 = scalar_lea.hbm %s5, %s1170
          %s1172 = sshll.u32 %s1156, 4
          %s1173 = int_to_ptr.vmem [resolvable:$true] %s1172
          %1178 = dma.vmem_to_hbm [thread:$0]  %s1173, 4096, %s1171, %s1153, 128, 128, 8
        $region52: #{tpu_custom_call.1} parent=39 // pred_fallthru
          _
        // Predicated region
        $region53: #{tpu_custom_call.1} parent=39 // pred_check
          %p1179 = pneg %p194
        $region54: #{tpu_custom_call.1} parent=39 // pred_check_branch
          %1181 = sbr.rel (%p1179) target = $region56
        $region55: #{tpu_custom_call.1} parent=39 // pred_region
          %s1183 = ssub.s32 16, 16
          %1184 = vsyncadd %s1158, %s1183
          %s1185 = smul.addr %s28, 16
          %s1186 = scalar_lea.hbm %s6, %s1185
          %s1188 = sshll.u32 %s1160, 4
          %s1189 = int_to_ptr.vmem [resolvable:$true] %s1188
          %1191 = dma.vmem_to_hbm [thread:$0]  %s1189, 16, %s1186, %s1158
        $region56: #{tpu_custom_call.1} parent=39 // pred_fallthru
          _
      $region40: #{tpu_custom_call.1} parent=5 // pred_fallthru
        _
      %p1192 = scmp.le.s32.totalorder 2, %s19
      // Predicated region
      $region57: #{tpu_custom_call.1} parent=5 // pred_check
        %p1193 = pneg %p1192
      $region58: #{tpu_custom_call.1} parent=5 // pred_check_branch
        %1195 = sbr.rel (%p1193) target = $region60
      $region59: #{tpu_custom_call.1} parent=5 // pred_region
        %s1196 = ssub.s32 %s19, 2
        // Predicated region
        $region61: #{tpu_custom_call.1} parent=59 // pred_check
          %p1197 = pneg %p174
        $region62: #{tpu_custom_call.1} parent=59 // pred_check_branch
          %1199 = sbr.rel (%p1197) target = $region64
        $region63: #{tpu_custom_call.1} parent=59 // pred_region
          %s1200 = sand.u32 %s159, 1
          %s1201 = scalar_lea.sflag [#allocation4], %s1200
          %s1202 = sand.u32 %s159, 1
          %s1203 = smul.addr %s1202, 256
          %s1204 = scalar_lea.vmem [#allocation3], %s1203
          %1205 = dma.done %s1201, 4096
        $region64: #{tpu_custom_call.1} parent=59 // pred_fallthru
          _
        // Predicated region
        $region65: #{tpu_custom_call.1} parent=59 // pred_check
          %p1206 = pneg %p200
        $region66: #{tpu_custom_call.1} parent=59 // pred_check_branch
          %1208 = sbr.rel (%p1206) target = $region68
        $region67: #{tpu_custom_call.1} parent=59 // pred_region
          %s1209 = sand.u32 %s185, 1
          %s1210 = scalar_lea.sflag [#allocation6], %s1209
          %s1211 = sand.u32 %s185, 1
          %s1212 = scalar_lea.vmem [#allocation5], %s1211
          %1213 = dma.done %s1210, 16
        $region68: #{tpu_custom_call.1} parent=59 // pred_fallthru
          _
      $region60: #{tpu_custom_call.1} parent=5 // pred_fallthru
        _
    $region6: #{tpu_custom_call.1} parent=1 // loop_footer
      %s23 = sadd.s32 1, %s19
    $region7: #{tpu_custom_call.1} parent=1 // loop_footer_branch
      %18 = sbr.rel target = $region3
    $region8: #{tpu_custom_call.1} parent=1 // loop_exit
      _
    %1214 = vsyncpa [#allocation4], 1
    %s1215 = scalar_lea.sflag [#allocation4], 1
    %1216 = vsyncpa %s1215, 1
    %1217 = vsyncpa [#allocation6], 1
    %s1218 = scalar_lea.sflag [#allocation6], 1
    %1219 = vsyncpa %s1218, 1

</llo_original>
